<compile_context>
chip_gen: v7x
topology: tpu7x:2x2x1
jax: 0.10.0
libtpu: 0.0.40
codegen_flags: <defaults>
</compile_context>

<pallas_src>
import functools

import jax
import jax.numpy as jnp
from jax import lax
from jax.experimental import pallas as pl
from jax.experimental.pallas import tpu as pltpu


def kps_loss_kernel(logits_ref, label_ref, s_list_ref, m_list_ref,
                    batch_s_ref, out_ref, acc_ref, *,
                    n_total, block_n, use_batch_s):
    i = pl.program_id(0)

    @pl.when(i == 0)
    def _init():
        acc_ref[...] = jnp.zeros_like(acc_ref)

    x = logits_ref[...].astype(jnp.float32)      # (BLOCK_N, C)
    labels = label_ref[...]                      # (BLOCK_N, 1) int32
    s_row = s_list_ref[...]                      # (1, C)  (pre-scaled by s if epoch<150)
    m_row = m_list_ref[...]                      # (1, C)  (pre-scaled by s if epoch<150)

    bn, c = x.shape

    # one-hot(label) via iota compare (== torch index.scatter_ along dim 1)
    col = lax.broadcasted_iota(jnp.int32, (bn, c), 1)
    onehot = col == labels                       # (BLOCK_N, C) bool

    # fused: cosine - onehot*m  ==  where(onehot, phi, cosine)
    output = x * s_row - jnp.where(onehot, m_row, jnp.float32(0.0))

    if use_batch_s:
        # epoch >= 150: per-sample scale = clamp(flip(s_list)*s, s, 50)[label]
        bs_row = batch_s_ref[...]                # (1, C)
        scale = jnp.sum(jnp.where(onehot, bs_row, jnp.float32(0.0)),
                        axis=1, keepdims=True)   # (BLOCK_N, 1)
        output = output * scale
    # else: epoch < 150 scale `s` already folded into s_row / m_row.

    # F.cross_entropy(output, label), mean reduction, no class weights.
    mx = jnp.max(output, axis=1, keepdims=True)
    lse = mx + jnp.log(jnp.sum(jnp.exp(output - mx), axis=1, keepdims=True))
    tgt = jnp.sum(jnp.where(onehot, output, jnp.float32(0.0)),
                  axis=1, keepdims=True)
    per_loss = lse - tgt                         # (BLOCK_N, 1)

    # Mask rows past the true batch size (only on a padded last tile).
    if n_total % block_n != 0:
        row = i * block_n + lax.broadcasted_iota(jnp.int32, (bn, 1), 0)
        per_loss = jnp.where(row < n_total, per_loss, jnp.float32(0.0))

    acc_ref[...] += jnp.sum(per_loss, axis=0, keepdims=True)

    @pl.when(i == pl.num_programs(0) - 1)
    def _finalize():
        out_ref[...] = acc_ref[...] * jnp.float32(1.0 / n_total)


def _round_up(x, m):
    return ((x + m - 1) // m) * m


def _choose_block_n(n, c, itemsize, target_bytes=8 * 1024 * 1024):
    """Rows per logits tile: ~8 MiB per buffer, multiple of 8, capped at N."""
    rows = target_bytes // max(c * itemsize, 1)
    rows = max(8, min(4096, (rows // 8) * 8))
    return int(min(rows, _round_up(n, 8)))


def make_kps_params(cls_num_list, max_m=0.5, s=30.0):
    """Deterministic re-implementation of KPSLoss.__init__ parameter setup."""
    arr = jnp.asarray(cls_num_list, jnp.float32)
    s_list = arr * (50.0 / jnp.min(arr))
    s_list = jnp.log(s_list)
    s_list = s_list * (1.0 / jnp.min(s_list))
    m_flipped = jnp.flip(s_list, axis=0)
    m_list = m_flipped * (max_m / jnp.max(m_flipped))
    batch_s = jnp.clip(jnp.flip(s_list, axis=0) * s, s, 50.0)
    return s_list, m_list, batch_s


def kps_loss(logits, label, epoch, s_list, m_list, batch_s, s=30.0,
             block_n=None):
    n, c = logits.shape
    elt = jnp.dtype(logits.dtype).itemsize
    if block_n is None:
        block_n = _choose_block_n(n, c, elt)
    block_n = max(8, _round_up(min(block_n, _round_up(n, 8)), 8))
    grid = (pl.cdiv(n, block_n),)

    # epoch is a Python scalar in the original module; the branch is static.
    use_batch_s = bool(epoch >= 150)

    label2d = label.astype(jnp.int32).reshape(n, 1)
    if use_batch_s:
        s_row = s_list.astype(jnp.float32).reshape(1, c)
        m_row = m_list.astype(jnp.float32).reshape(1, c)
    else:
        # Fold the constant scale `s` into the tiny (1, C) parameter rows so
        # the kernel's hot path is a single fused tile-wide multiply/subtract.
        s_row = (s_list.astype(jnp.float32) * jnp.float32(s)).reshape(1, c)
        m_row = (m_list.astype(jnp.float32) * jnp.float32(s)).reshape(1, c)
    bs_row = batch_s.astype(jnp.float32).reshape(1, c)

    kernel = functools.partial(
        kps_loss_kernel, n_total=n, block_n=block_n, use_batch_s=use_batch_s)

    # Double-buffered logits + labels tiles plus the small resident rows.
    tile_bytes = block_n * c * elt + block_n * 4 + 3 * c * 4
    vmem_limit = int(min(max(4 * tile_bytes + (4 << 20), 16 << 20), 48 << 20))

    out = pl.pallas_call(
        kernel,
        out_shape=jax.ShapeDtypeStruct((1, 1), jnp.float32),
        grid_spec=pltpu.PrefetchScalarGridSpec(
            num_scalar_prefetch=0,
            grid=grid,
            in_specs=[
                pl.BlockSpec((block_n, c), lambda i: (i, 0)),   # logits tile
                pl.BlockSpec((block_n, 1), lambda i: (i, 0)),   # labels tile
                pl.BlockSpec((1, c), lambda i: (0, 0)),         # s_list row
                pl.BlockSpec((1, c), lambda i: (0, 0)),         # m_list row
                pl.BlockSpec((1, c), lambda i: (0, 0)),         # batch_s row
            ],
            out_specs=pl.BlockSpec((1, 1), lambda i: (0, 0)),
            scratch_shapes=[pltpu.VMEM((1, 1), jnp.float32)],
        ),
        compiler_params=pltpu.CompilerParams(
            dimension_semantics=("arbitrary",),
            vmem_limit_bytes=vmem_limit,
        ),
    )(logits, label2d, s_row, m_row, bs_row)
    return out[0, 0]


def kps_loss_ref(logits, label, epoch, s_list, m_list, batch_s, s=30.0):
    """Pure-JAX reference mirroring the PyTorch forward."""
    logits = logits.astype(jnp.float32)
    cosine = logits * s_list[None, :]
    phi = cosine - m_list[None, :]
    onehot = jax.nn.one_hot(label, logits.shape[1], dtype=jnp.float32)
    output = jnp.where(onehot > 0, phi, cosine)
    if epoch < 150:
        output = output * s
    else:
        per = (batch_s[None, :] @ onehot.T).reshape(-1, 1)
        output = output * per
    logp = jax.nn.log_softmax(output, axis=1)
    return -jnp.mean(jnp.sum(onehot * logp, axis=1))


if __name__ == "__main__":
    key = jax.random.PRNGKey(0)
    N, C = 40, 16          # N not a multiple of the tile -> exercises masking
    BLOCK_N = 16           # 3 grid steps (last one padded)
    S = 30.0

    # synthetic long-tailed class-count list (KPSLoss __init__ input)
    cls_num_list = [int(1000 * (0.8 ** i)) + 1 for i in range(C)]
    s_list, m_list, batch_s = make_kps_params(cls_num_list, max_m=0.5, s=S)

    k1, k2 = jax.random.split(key)
    logits = jax.random.normal(k1, (N, C), dtype=jnp.float32)
    label = jax.random.randint(k2, (N,), 0, C, dtype=jnp.int32)

    # exercise both epoch branches (epoch < 150 and >= 150)
    for epoch in (10, 200):
        out = kps_loss(logits, label, epoch, s_list, m_list, batch_s, s=S,
                       block_n=BLOCK_N)
        out = jax.block_until_ready(out)
        ref = kps_loss_ref(logits, label, epoch, s_list, m_list, batch_s, s=S)
        assert jnp.allclose(out, ref, rtol=1e-4, atol=1e-4), (epoch, out, ref)

    # full-batch single tile (no masking path)
    out = kps_loss(logits, label, 10, s_list, m_list, batch_s, s=S)
    out = jax.block_until_ready(out)
    ref = kps_loss_ref(logits, label, 10, s_list, m_list, batch_s, s=S)
    assert jnp.allclose(out, ref, rtol=1e-4, atol=1e-4), (out, ref)

    # bf16 logits path (halves HBM reads; math stays f32 in-kernel)
    logits_bf16 = logits.astype(jnp.bfloat16)
    out = kps_loss(logits_bf16, label, 200, s_list, m_list, batch_s, s=S,
                   block_n=BLOCK_N)
    out = jax.block_until_ready(out)
    ref = kps_loss_ref(logits_bf16.astype(jnp.float32), label, 200,
                       s_list, m_list, batch_s, s=S)
    assert jnp.allclose(out, ref, rtol=1e-3, atol=1e-3), (out, ref)

    print("KERNEL_OK")
</pallas_src>

<mosaic_0001>
module attributes {stable_mosaic.version = 11 : i64} {
  func.func @kps_loss_kernel(%arg0: i32, %arg1: memref<16x16xf32, #tpu.memory_space<vmem>>, %arg2: memref<16x1xi32, #tpu.memory_space<vmem>>, %arg3: memref<1x16xf32, #tpu.memory_space<vmem>>, %arg4: memref<1x16xf32, #tpu.memory_space<vmem>>, %arg5: memref<1x16xf32, #tpu.memory_space<vmem>>, %arg6: memref<1x1xf32, #tpu.memory_space<vmem>>, %arg7: memref<1x1xf32, #tpu.memory_space<vmem>>) attributes {dimension_semantics = [#tpu.dimension_semantics<arbitrary>], iteration_bounds = array<i64: 3>, scalar_prefetch = 0 : i64, scratch_operands = 1 : i64, tpu.core_type = #tpu.core_type<tc>, window_params = [{transform_indices = @transform_0, window_bounds = array<i64: 16, 16>}, {transform_indices = @transform_1, window_bounds = array<i64: 16, 1>}, {pipeline_mode = #tpu.pipeline_mode<synchronous>, transform_indices = @transform_2, window_bounds = array<i64: 1, 16>}, {pipeline_mode = #tpu.pipeline_mode<synchronous>, transform_indices = @transform_3, window_bounds = array<i64: 1, 16>}, {pipeline_mode = #tpu.pipeline_mode<synchronous>, transform_indices = @transform_4, window_bounds = array<i64: 1, 16>}, {pipeline_mode = #tpu.pipeline_mode<synchronous>, transform_indices = @transform_5, window_bounds = array<i64: 1, 1>}]} {
    %c0_i32 = arith.constant 0 : i32
    %0 = arith.cmpi eq, %arg0, %c0_i32 : i32
    %1 = arith.extui %0 : i1 to i32
    %c0_i32_0 = arith.constant 0 : i32
    %2 = arith.cmpi ne, %1, %c0_i32_0 : i32
    scf.if %2 {
      %cst_19 = arith.constant 0.000000e+00 : f32
      %47 = vector.broadcast %cst_19 : f32 to vector<1x1xf32>
      %c0_20 = arith.constant 0 : index
      %c0_21 = arith.constant 0 : index
      %48 = vector.load %arg7[%c0_20, %c0_21] : memref<1x1xf32, #tpu.memory_space<vmem>>, vector<1x1xf32>
      tpu.vector_store %arg7[%c0_20, %c0_21], %47 {strides = array<i32>} : memref<1x1xf32, #tpu.memory_space<vmem>>, vector<1x1xf32>,
    } else {
    }
    %c0 = arith.constant 0 : index
    %c0_1 = arith.constant 0 : index
    %3 = vector.load %arg1[%c0, %c0_1] : memref<16x16xf32, #tpu.memory_space<vmem>>, vector<16x16xf32>
    %c0_2 = arith.constant 0 : index
    %c0_3 = arith.constant 0 : index
    %4 = vector.load %arg2[%c0_2, %c0_3] : memref<16x1xi32, #tpu.memory_space<vmem>>, vector<16x1xi32>
    %c0_4 = arith.constant 0 : index
    %c0_5 = arith.constant 0 : index
    %5 = vector.load %arg3[%c0_4, %c0_5] : memref<1x16xf32, #tpu.memory_space<vmem>>, vector<1x16xf32>
    %c0_6 = arith.constant 0 : index
    %c0_7 = arith.constant 0 : index
    %6 = vector.load %arg4[%c0_6, %c0_7] : memref<1x16xf32, #tpu.memory_space<vmem>>, vector<1x16xf32>
    %7 = tpu.iota {dimensions = array<i32: 1>} : vector<16x16xi32>
    %8 = vector.broadcast %4 : vector<16x1xi32> to vector<16x16xi32>
    %9 = arith.cmpi eq, %7, %8 : vector<16x16xi32>
    %10 = vector.broadcast %5 : vector<1x16xf32> to vector<16x16xf32>
    %11 = arith.mulf %3, %10 : vector<16x16xf32>
    %cst = arith.constant 0.000000e+00 : f32
    %12 = vector.shape_cast %6 : vector<1x16xf32> to vector<1x16xf32>
    %13 = vector.broadcast %12 : vector<1x16xf32> to vector<16x16xf32>
    %14 = vector.broadcast %cst : f32 to vector<16x16xf32>
    %15 = arith.select %9, %13, %14 : vector<16x16xi1>, vector<16x16xf32>
    %16 = arith.subf %11, %15 : vector<16x16xf32>
    %cst_8 = arith.constant dense<0xFF800000> : vector<16xf32>
    %17 = vector.multi_reduction <maximumf>, %16, %cst_8 [1] : vector<16x16xf32> to vector<16xf32>
    %18 = vector.shape_cast %17 : vector<16xf32> to vector<16x1xf32>
    %19 = vector.broadcast %18 : vector<16x1xf32> to vector<16x16xf32>
    %20 = arith.subf %16, %19 : vector<16x16xf32>
    %21 = math.exp %20 : vector<16x16xf32>
    %cst_9 = arith.constant dense<0.000000e+00> : vector<16xf32>
    %22 = vector.multi_reduction <add>, %21, %cst_9 [1] : vector<16x16xf32> to vector<16xf32>
    %23 = vector.shape_cast %22 : vector<16xf32> to vector<16x1xf32>
    %24 = math.log %23 : vector<16x1xf32>
    %25 = arith.addf %18, %24 : vector<16x1xf32>
    %cst_10 = arith.constant 0.000000e+00 : f32
    %26 = vector.broadcast %cst_10 : f32 to vector<16x16xf32>
    %27 = arith.select %9, %16, %26 : vector<16x16xi1>, vector<16x16xf32>
    %cst_11 = arith.constant dense<0.000000e+00> : vector<16xf32>
    %28 = vector.multi_reduction <add>, %27, %cst_11 [1] : vector<16x16xf32> to vector<16xf32>
    %29 = vector.shape_cast %28 : vector<16xf32> to vector<16x1xf32>
    %30 = arith.subf %25, %29 : vector<16x1xf32>
    %c16_i32 = arith.constant 16 : i32
    %31 = arith.muli %arg0, %c16_i32 : i32
    %32 = tpu.iota {dimensions = array<i32: 0>} : vector<16x1xi32>
    %33 = vector.broadcast %31 : i32 to vector<16x1xi32>
    %34 = arith.addi %33, %32 : vector<16x1xi32>
    %c40_i32 = arith.constant 40 : i32
    %35 = vector.broadcast %c40_i32 : i32 to vector<16x1xi32>
    %36 = arith.cmpi slt, %34, %35 : vector<16x1xi32>
    %cst_12 = arith.constant 0.000000e+00 : f32
    %37 = vector.broadcast %cst_12 : f32 to vector<16x1xf32>
    %38 = arith.select %36, %30, %37 : vector<16x1xi1>, vector<16x1xf32>
    %c0_13 = arith.constant 0 : index
    %c0_14 = arith.constant 0 : index
    %39 = vector.load %arg7[%c0_13, %c0_14] : memref<1x1xf32, #tpu.memory_space<vmem>>, vector<1x1xf32>
    %cst_15 = arith.constant dense<0.000000e+00> : vector<1xf32>
    %40 = vector.multi_reduction <add>, %38, %cst_15 [0] : vector<16x1xf32> to vector<1xf32>
    %41 = vector.shape_cast %40 : vector<1xf32> to vector<1x1xf32>
    %42 = arith.addf %39, %41 : vector<1x1xf32>
    %c0_16 = arith.constant 0 : index
    %c0_17 = arith.constant 0 : index
    %43 = vector.load %arg7[%c0_16, %c0_17] : memref<1x1xf32, #tpu.memory_space<vmem>>, vector<1x1xf32>
    tpu.vector_store %arg7[%c0_16, %c0_17], %42 {strides = array<i32>} : memref<1x1xf32, #tpu.memory_space<vmem>>, vector<1x1xf32>,
    %c2_i32 = arith.constant 2 : i32
    %44 = arith.cmpi eq, %arg0, %c2_i32 : i32
    %45 = arith.extui %44 : i1 to i32
    %c0_i32_18 = arith.constant 0 : i32
    %46 = arith.cmpi ne, %45, %c0_i32_18 : i32
    scf.if %46 {
      %c0_19 = arith.constant 0 : index
      %c0_20 = arith.constant 0 : index
      %47 = vector.load %arg7[%c0_19, %c0_20] : memref<1x1xf32, #tpu.memory_space<vmem>>, vector<1x1xf32>
      %cst_21 = arith.constant 2.500000e-02 : f32
      %48 = vector.broadcast %cst_21 : f32 to vector<1x1xf32>
      %49 = arith.mulf %47, %48 : vector<1x1xf32>
      %c0_22 = arith.constant 0 : index
      %c0_23 = arith.constant 0 : index
      %50 = vector.load %arg6[%c0_22, %c0_23] : memref<1x1xf32, #tpu.memory_space<vmem>>, vector<1x1xf32>
      tpu.vector_store %arg6[%c0_22, %c0_23], %49 {strides = array<i32>} : memref<1x1xf32, #tpu.memory_space<vmem>>, vector<1x1xf32>,
    } else {
    }
    return
  }
  func.func @transform_0(%arg0: i32) -> (i32, i32) {
    %c0_i32 = arith.constant 0 : i32
    %c0_i32_0 = arith.constant 0 : i32
    return %arg0, %c0_i32 : i32, i32
  }
  func.func @transform_1(%arg0: i32) -> (i32, i32) {
    %c0_i32 = arith.constant 0 : i32
    %c0_i32_0 = arith.constant 0 : i32
    return %arg0, %c0_i32 : i32, i32
  }
  func.func @transform_2(%arg0: i32) -> (i32, i32) {
    %c0_i32 = arith.constant 0 : i32
    %c0_i32_0 = arith.constant 0 : i32
    %c0_i32_1 = arith.constant 0 : i32
    return %c0_i32, %c0_i32_0 : i32, i32
  }
  func.func @transform_3(%arg0: i32) -> (i32, i32) {
    %c0_i32 = arith.constant 0 : i32
    %c0_i32_0 = arith.constant 0 : i32
    %c0_i32_1 = arith.constant 0 : i32
    return %c0_i32, %c0_i32_0 : i32, i32
  }
  func.func @transform_4(%arg0: i32) -> (i32, i32) {
    %c0_i32 = arith.constant 0 : i32
    %c0_i32_0 = arith.constant 0 : i32
    %c0_i32_1 = arith.constant 0 : i32
    return %c0_i32, %c0_i32_0 : i32, i32
  }
  func.func @transform_5(%arg0: i32) -> (i32, i32) {
    %c0_i32 = arith.constant 0 : i32
    %c0_i32_0 = arith.constant 0 : i32
    %c0_i32_1 = arith.constant 0 : i32
    return %c0_i32, %c0_i32_0 : i32, i32
  }
}

</mosaic_0001>

<llo_original>
// kernel: tpu_custom_call.1
$region0: #{tpu_custom_call.1}
  #allocation0 [shape = 'u32[]', space=smem, size = 0x4, offset = 0x4, fixed_abs, tag = 'smem constant byte address 0x4 - core index']
  #allocation1 [shape = 'u32[144,128]{1,0:T(1,128)}', space=vmem, size = 0x12000, scoped, tag = 'internal scratch']
  #allocation2 [shape = 'f32[1,1]{1,0:T(1,128)}', space=vmem, size = 0x200, scoped, tag = 'scratch operand']
  %s0 = inlined_call_operand.vmem [shape: f32[40,16], index: 0, kind: input, shape index: {}]
  %s1 = inlined_call_operand.vmem [shape: s32[40,1], index: 1, kind: input, shape index: {}]
  %s2 = inlined_call_operand.vmem [shape: f32[1,16], index: 2, kind: input, shape index: {}]
  %s3 = inlined_call_operand.vmem [shape: f32[1,16], index: 3, kind: input, shape index: {}]
  %s4 = inlined_call_operand.vmem [shape: f32[1,16], index: 4, kind: input, shape index: {}]
  %s5 = inlined_call_operand.hbm [shape: f32[1,1], index: 5, kind: output, shape index: {}]
  %s6 = sld [smem:[#allocation0]]
  $region61: #{tpu_custom_call.1} parent=0
    _
  %s8 = ssub.s32 1, %s6
  %s9 = scalar_select 0, %s8, %s6
  $region1: #{tpu_custom_call.1} parent=0
    #allocation3 [shape = 'u8[512]{0}', space=vmem, size = 0x400, scoped, tag = 'output window, operand 0, single buffered']
    #allocation4 [shape = 's32[2]{0}', space=sflag, size = 0x8, scoped, tag = 'scoped memory for tpu_custom_call.1']
    %10 = vsyncpa [#allocation4], 0
    loop: start=0, step=1, limit=5
    $region2: #{tpu_custom_call.1} parent=1 // loop_pre_header
      _
    $region3: #{tpu_custom_call.1} parent=1 // loop_header
      %s12 = sphi 0, %s16
      %p13 = scmp.ge.s32.totalorder %s12, 5
      %s22 = sphi 0, %s24
      %s25 = sphi 0, %s22
      %s26 = sphi 0, %s25
      %s42 = sphi 0, %s26
      %s48 = sphi 0, %s50
      %s51 = sphi 0, %s48
      %s52 = sphi 0, %s51
      %s68 = sphi 0, %s52
      %s72 = sphi 0, %s72
      %s74 = sphi 0, %s72
      %s75 = sphi 0, %s74
      %s89 = sphi 0, %s75
      %s93 = sphi 0, %s93
      %s95 = sphi 0, %s93
      %s96 = sphi 0, %s95
      %s110 = sphi 0, %s96
      %s114 = sphi 0, %s114
      %s116 = sphi 0, %s114
      %s117 = sphi 0, %s116
      %s131 = sphi 0, %s117
      %s135 = sphi 0, %s135
      %s137 = sphi 0, %s135
      %s138 = sphi 0, %s137
      %s152 = sphi 0, %s138
    $region4: #{tpu_custom_call.1} parent=1 // loop_header_branch
      %15 = sbr.rel (%p13) target = $region8
    $region5: #{tpu_custom_call.1} parent=1 // loop_body
      %s17 = ssub.s32 %s12, 1
      %s18 = ssub.s32 %s12, 2
      %s19 = sadd.s32 %s12, 1
      %s20 = ssub.s32 %s12, %s19
      %p21 = scmp.eq.s32.totalorder %s20, 0
      %s23 = sadd.s32 %s22, 1
      %s24 = scalar_select %p21, %s22, %s23
      %p27 = pneg %p21
      %p28 = scmp.eq.s32.totalorder %s12, 2
      %p29 = por %p27, %p28
      %p30 = scmp.ne.s32.totalorder %s22, %s25
      %p31 = scmp.eq.s32.totalorder %s12, 0
      %p32 = por %p30, %p31
      %p33 = scmp.ne.s32.totalorder %s22, %s25
      %p34 = scmp.eq.s32.totalorder %s17, 2
      %p35 = por %p33, %p34
      %p36 = scmp.ne.s32.totalorder %s25, %s26
      %p37 = scmp.eq.s32.totalorder %s17, 0
      %p38 = por %p36, %p37
      %p39 = scmp.ne.s32.totalorder %s25, %s26
      %p40 = scmp.eq.s32.totalorder %s18, 2
      %p41 = por %p39, %p40
      %p43 = scmp.ne.s32.totalorder %s26, %s42
      %p44 = scmp.eq.s32.totalorder %s18, 0
      %p45 = por %p43, %p44
      %s46 = ssub.s32 %s12, %s19
      %p47 = scmp.eq.s32.totalorder %s46, 0
      %s49 = sadd.s32 %s48, 1
      %s50 = scalar_select %p47, %s48, %s49
      %p53 = pneg %p47
      %p54 = scmp.eq.s32.totalorder %s12, 2
      %p55 = por %p53, %p54
      %p56 = scmp.ne.s32.totalorder %s48, %s51
      %p57 = scmp.eq.s32.totalorder %s12, 0
      %p58 = por %p56, %p57
      %p59 = scmp.ne.s32.totalorder %s48, %s51
      %p60 = scmp.eq.s32.totalorder %s17, 2
      %p61 = por %p59, %p60
      %p62 = scmp.ne.s32.totalorder %s51, %s52
      %p63 = scmp.eq.s32.totalorder %s17, 0
      %p64 = por %p62, %p63
      %p65 = scmp.ne.s32.totalorder %s51, %s52
      %p66 = scmp.eq.s32.totalorder %s18, 2
      %p67 = por %p65, %p66
      %p69 = scmp.ne.s32.totalorder %s52, %s68
      %p70 = scmp.eq.s32.totalorder %s18, 0
      %p71 = por %p69, %p70
      %s73 = sadd.s32 %s72, 1
      %p76 = scmp.eq.s32.totalorder %s12, 2
      %p77 = scmp.ne.s32.totalorder %s72, %s74
      %p78 = scmp.eq.s32.totalorder %s12, 0
      %p79 = por %p77, %p78
      %p80 = scmp.ne.s32.totalorder %s72, %s74
      %p81 = scmp.eq.s32.totalorder %s17, 2
      %p82 = por %p80, %p81
      %p83 = scmp.ne.s32.totalorder %s74, %s75
      %p84 = scmp.eq.s32.totalorder %s17, 0
      %p85 = por %p83, %p84
      %p86 = scmp.ne.s32.totalorder %s74, %s75
      %p87 = scmp.eq.s32.totalorder %s18, 2
      %p88 = por %p86, %p87
      %p90 = scmp.ne.s32.totalorder %s75, %s89
      %p91 = scmp.eq.s32.totalorder %s18, 0
      %p92 = por %p90, %p91
      %s94 = sadd.s32 %s93, 1
      %p97 = scmp.eq.s32.totalorder %s12, 2
      %p98 = scmp.ne.s32.totalorder %s93, %s95
      %p99 = scmp.eq.s32.totalorder %s12, 0
      %p100 = por %p98, %p99
      %p101 = scmp.ne.s32.totalorder %s93, %s95
      %p102 = scmp.eq.s32.totalorder %s17, 2
      %p103 = por %p101, %p102
      %p104 = scmp.ne.s32.totalorder %s95, %s96
      %p105 = scmp.eq.s32.totalorder %s17, 0
      %p106 = por %p104, %p105
      %p107 = scmp.ne.s32.totalorder %s95, %s96
      %p108 = scmp.eq.s32.totalorder %s18, 2
      %p109 = por %p107, %p108
      %p111 = scmp.ne.s32.totalorder %s96, %s110
      %p112 = scmp.eq.s32.totalorder %s18, 0
      %p113 = por %p111, %p112
      %s115 = sadd.s32 %s114, 1
      %p118 = scmp.eq.s32.totalorder %s12, 2
      %p119 = scmp.ne.s32.totalorder %s114, %s116
      %p120 = scmp.eq.s32.totalorder %s12, 0
      %p121 = por %p119, %p120
      %p122 = scmp.ne.s32.totalorder %s114, %s116
      %p123 = scmp.eq.s32.totalorder %s17, 2
      %p124 = por %p122, %p123
      %p125 = scmp.ne.s32.totalorder %s116, %s117
      %p126 = scmp.eq.s32.totalorder %s17, 0
      %p127 = por %p125, %p126
      %p128 = scmp.ne.s32.totalorder %s116, %s117
      %p129 = scmp.eq.s32.totalorder %s18, 2
      %p130 = por %p128, %p129
      %p132 = scmp.ne.s32.totalorder %s117, %s131
      %p133 = scmp.eq.s32.totalorder %s18, 0
      %p134 = por %p132, %p133
      %s136 = sadd.s32 %s135, 1
      %p139 = scmp.eq.s32.totalorder %s12, 2
      %p140 = scmp.ne.s32.totalorder %s135, %s137
      %p141 = scmp.eq.s32.totalorder %s12, 0
      %p142 = por %p140, %p141
      %p143 = scmp.ne.s32.totalorder %s135, %s137
      %p144 = scmp.eq.s32.totalorder %s17, 2
      %p145 = por %p143, %p144
      %p146 = scmp.ne.s32.totalorder %s137, %s138
      %p147 = scmp.eq.s32.totalorder %s17, 0
      %p148 = por %p146, %p147
      %p149 = scmp.ne.s32.totalorder %s137, %s138
      %p150 = scmp.eq.s32.totalorder %s18, 2
      %p151 = por %p149, %p150
      %p153 = scmp.ne.s32.totalorder %s138, %s152
      %p154 = scmp.eq.s32.totalorder %s18, 0
      %p155 = por %p153, %p154
      %p156 = scmp.le.s32.totalorder 1, %s12
      %p157 = scmp.lt.s32.totalorder %s12, 4
      %p158 = pnand %p156, %p157
      %p159 = pneg %p158
      // Predicated region
      $region9: #{tpu_custom_call.1} parent=5 // pred_check
        _
      $region10: #{tpu_custom_call.1} parent=5 // pred_check_branch
        %161 = sbr.rel (%p158) target = $region12
      $region11: #{tpu_custom_call.1} parent=5 // pred_region
        %s162 = ssub.s32 %s12, 1
        // Predicated region
        $region13: #{tpu_custom_call.1} parent=11 // pred_check
          %p163 = pneg %p85
        $region14: #{tpu_custom_call.1} parent=11 // pred_check_branch
          %165 = sbr.rel (%p163) target = $region16
        $region15: #{tpu_custom_call.1} parent=11 // pred_region
          _
        $region16: #{tpu_custom_call.1} parent=11 // pred_fallthru
          _
        // Predicated region
        $region17: #{tpu_custom_call.1} parent=11 // pred_check
          %p166 = pneg %p106
        $region18: #{tpu_custom_call.1} parent=11 // pred_check_branch
          %168 = sbr.rel (%p166) target = $region20
        $region19: #{tpu_custom_call.1} parent=11 // pred_region
          _
        $region20: #{tpu_custom_call.1} parent=11 // pred_fallthru
          _
        // Predicated region
        $region21: #{tpu_custom_call.1} parent=11 // pred_check
          %p169 = pneg %p127
        $region22: #{tpu_custom_call.1} parent=11 // pred_check_branch
          %171 = sbr.rel (%p169) target = $region24
        $region23: #{tpu_custom_call.1} parent=11 // pred_region
          _
        $region24: #{tpu_custom_call.1} parent=11 // pred_fallthru
          _
      $region12: #{tpu_custom_call.1} parent=5 // pred_fallthru
        _
      %p172 = scmp.lt.s32.totalorder %s12, 3
      // Predicated region
      $region25: #{tpu_custom_call.1} parent=5 // pred_check
        %p173 = pneg %p172
      $region26: #{tpu_custom_call.1} parent=5 // pred_check_branch
        %175 = sbr.rel (%p173) target = $region28
      $region27: #{tpu_custom_call.1} parent=5 // pred_region
        // Predicated region
        $region29: #{tpu_custom_call.1} parent=27 // pred_check
          %p176 = pneg %p32
        $region30: #{tpu_custom_call.1} parent=27 // pred_check_branch
          %178 = sbr.rel (%p176) target = $region32
        $region31: #{tpu_custom_call.1} parent=27 // pred_region
          %s179 = smul.u32 2, %s12
          %s180 = ssub.s32 5, %s179
          %p181 = scmp.lt.s32.totalorder %s180, 2
          %s182 = scalar_select %p181, %s180, 2
          %s183 = smul.u32 128, %s182
          %p184 = scmp.lt.s32.totalorder %s179, 4
          %s185 = scalar_select %p184, %s179, 4
          %s186 = smul.addr %s185, 8
          %s187 = scalar_lea.vmem %s0, %s186
          %s188 = smul.u32 2, %s12
          %s189 = ssub.s32 5, %s188
          %p190 = scmp.lt.s32.totalorder %s189, 2
          %s191 = scalar_select %p190, %s189, 2
          %s192 = smul.u32 128, %s191
        $region32: #{tpu_custom_call.1} parent=27 // pred_fallthru
          _
        // Predicated region
        $region33: #{tpu_custom_call.1} parent=27 // pred_check
          %p193 = pneg %p58
        $region34: #{tpu_custom_call.1} parent=27 // pred_check_branch
          %195 = sbr.rel (%p193) target = $region36
        $region35: #{tpu_custom_call.1} parent=27 // pred_region
          %s196 = smul.u32 2, %s12
          %s197 = ssub.s32 5, %s196
          %p198 = scmp.lt.s32.totalorder %s197, 2
          %s199 = scalar_select %p198, %s197, 2
          %s200 = smul.u32 128, %s199
          %p201 = scmp.lt.s32.totalorder %s196, 4
          %s202 = scalar_select %p201, %s196, 4
          %s203 = smul.addr %s202, 8
          %s204 = scalar_lea.vmem %s1, %s203
          %s205 = smul.u32 2, %s12
          %s206 = ssub.s32 5, %s205
          %p207 = scmp.lt.s32.totalorder %s206, 2
          %s208 = scalar_select %p207, %s206, 2
          %s209 = smul.u32 128, %s208
        $region36: #{tpu_custom_call.1} parent=27 // pred_fallthru
          _
      $region28: #{tpu_custom_call.1} parent=5 // pred_fallthru
        _
      %p210 = scmp.le.s32.totalorder 1, %s12
      %p211 = scmp.lt.s32.totalorder %s12, 4
      %p212 = pnand %p210, %p211
      %p213 = pneg %p212
      // Predicated region
      $region37: #{tpu_custom_call.1} parent=5 // pred_check
        _
      $region38: #{tpu_custom_call.1} parent=5 // pred_check_branch
        %215 = sbr.rel (%p212) target = $region40
      $region39: #{tpu_custom_call.1} parent=5 // pred_region
        %s216 = ssub.s32 %s12, 1
        %s217 = smul.u32 2, %s17
        %s218 = ssub.s32 5, %s217
        %p219 = scmp.lt.s32.totalorder %s218, 2
        %s220 = scalar_select %p219, %s218, 2
        %s221 = smul.u32 128, %s220
        %p222 = scmp.lt.s32.totalorder %s217, 4
        %s223 = scalar_select %p222, %s217, 4
        %s224 = smul.addr %s223, 8
        %s225 = scalar_lea.vmem %s0, %s224
        %p226 = pneg %p38
        %p227 = pneg %p35
        %s228 = smul.u32 2, %s17
        %s229 = ssub.s32 5, %s228
        %p230 = scmp.lt.s32.totalorder %s229, 2
        %s231 = scalar_select %p230, %s229, 2
        %s232 = smul.u32 128, %s231
        %p233 = scmp.lt.s32.totalorder %s228, 4
        %s234 = scalar_select %p233, %s228, 4
        %s235 = smul.addr %s234, 8
        %s236 = scalar_lea.vmem %s1, %s235
        %p237 = pneg %p64
        %p238 = pneg %p61
        %p239 = pneg %p85
        %p240 = pneg %p82
        %p241 = pneg %p106
        %p242 = pneg %p103
        %p243 = pneg %p127
        %p244 = pneg %p124
        %p245 = pneg %p148
        %p246 = pneg %p145
        %s247 = smul.u32 2, %s17
        %s248 = ssub.s32 5, %s247
        %p249 = scmp.lt.s32.totalorder %s248, 2
        %s250 = scalar_select %p249, %s248, 2
        %s251 = smul.u32 128, %s250
        %p252 = scmp.lt.s32.totalorder %s247, 4
        %s253 = scalar_select %p252, %s247, 4
        %s254 = smul.addr %s253, 8
        %s255 = scalar_lea.vmem %s0, %s254
        %s256 = smul.u32 2, %s17
        %s257 = ssub.s32 5, %s256
        %p258 = scmp.lt.s32.totalorder %s257, 2
        %s259 = scalar_select %p258, %s257, 2
        %s260 = smul.u32 128, %s259
        %s261 = smul.u32 2, %s17
        %s262 = ssub.s32 5, %s261
        %p263 = scmp.lt.s32.totalorder %s262, 2
        %s264 = scalar_select %p263, %s262, 2
        %s265 = smul.u32 128, %s264
        %p266 = scmp.lt.s32.totalorder %s261, 4
        %s267 = scalar_select %p266, %s261, 4
        %s268 = smul.addr %s267, 8
        %s269 = scalar_lea.vmem %s1, %s268
        %s270 = smul.u32 2, %s17
        %s271 = ssub.s32 5, %s270
        %p272 = scmp.lt.s32.totalorder %s271, 2
        %s273 = scalar_select %p272, %s271, 2
        %s274 = smul.u32 128, %s273
        %p275 = scmp.eq.s32.totalorder %s17, 0
        // Predicated region
        $region41: #{tpu_custom_call.1} parent=39 // pred_check
          %p276 = pneg %p275
        $region42: #{tpu_custom_call.1} parent=39 // pred_check_branch
          %278 = sbr.rel (%p276) target = $region44
        $region43: #{tpu_custom_call.1} parent=39 // pred_region
          %vm279 = vcmask 0
          %280 = vst.msk [vmem:[#allocation2] sm:$0x1] %vm279, 0.0
        $region44: #{tpu_custom_call.1} parent=39 // pred_fallthru
          _
        %v281 = vld [vmem:[%s255] sm:$0xff]
        %v282 = vld [vmem:[%s255 + $0x8] sm:$0xff]
        %v283 = vld [vmem:[%s269] sm:$0xff]
        %v284 = vld [vmem:[%s269 + $0x8] sm:$0xff]
        %v285 = vld [vmem:[%s2] sm:$0x1]
        %v286 = vld [vmem:[%s3] sm:$0x1]
        %v287 = vlaneseq
        %v288 = vand.u32 %v287, 127
        %289 = vset.pattern.permute.xlu0 0
        %290 = vperm.xlu0 %289, %v283
        %v291 = vpop.permute.xlu0 %290
        %292 = vset.pattern.permute.xlu0 0
        %293 = vperm.xlu0 %292, %v284
        %v294 = vpop.permute.xlu0 %293
        %vm295 = vcmp.eq.s32.totalorder %v288, %v291
        %vm296 = vcmp.eq.s32.totalorder %v288, %v294
        %v298 = vlaneseq
        %v299 = vshrl.u32 %v298, 7
        %v300 = vsub.s32 0, %v299
        %v301 = vrot.slane %v285, %v300
        %v303 = vmul.f32 %v281, %v301
        %v304 = vmul.f32 %v282, %v301
        %v306 = vlaneseq
        %v307 = vshrl.u32 %v306, 7
        %v308 = vsub.s32 0, %v307
        %v309 = vrot.slane %v286, %v308
        %v311 = vsel %vm295, %v309, 0.0
        %v312 = vsel %vm296, %v309, 0.0
        %v313 = vsub.f32 %v303, %v311
        %v314 = vsub.f32 %v304, %v312
        %vm315 = vcmask 130048
        %v316 = vsel %vm315, %v313, -inf
        %317 = vmax.xlane.f32.xlu0 %v316
        %v318 = vpop.xlane.xlu0 %317
        %v319 = vsel %vm315, %v314, -inf
        %320 = vmax.xlane.f32.xlu0 %v319
        %v321 = vpop.xlane.xlu0 %320
        %v322 = vsub.f32 %v313, %v318
        %v323 = vsub.f32 %v314, %v321
        %v324 = vmul.f32 %v322, 1.442695
        %v325 = vpow.pop %v324
        %v326 = vmul.f32 %v323, 1.442695
        %v327 = vpow.pop %v326
        %v328 = vsel %vm315, %v325, 0.0
        %329 = vadd.xlane.f32.xlu0 %v328
        %v330 = vpop.xlane.xlu0 %329
        %v331 = vsel %vm315, %v327, 0.0
        %332 = vadd.xlane.f32.xlu0 %v331
        %v333 = vpop.xlane.xlu0 %332
        %v334 = vlog2.pop %v330
        %v335 = vmul.f32 %v334, 0.6931472
        %v336 = vlog2.pop %v333
        %v337 = vmul.f32 %v336, 0.6931472
        %v338 = vadd.f32 %v318, %v335
        %v339 = vadd.f32 %v321, %v337
        %v340 = vsel %vm295, %v313, 0.0
        %v341 = vsel %vm296, %v314, 0.0
        %v342 = vsel %vm315, %v340, 0.0
        %343 = vadd.xlane.f32.xlu0 %v342
        %v344 = vpop.xlane.xlu0 %343
        %v345 = vsel %vm315, %v341, 0.0
        %346 = vadd.xlane.f32.xlu0 %v345
        %v347 = vpop.xlane.xlu0 %346
        %v348 = vsub.f32 %v338, %v344
        %v349 = vsub.f32 %v339, %v347
        %s350 = smul.u32 %s17, 16
        %v351 = vlaneseq
        %v352 = vshrl.u32 %v351, 7
        %v353 = vadd.s32 %v352, 8
        %v354 = vstv %s350
        %v355 = vadd.s32 %v354, %v352
        %v356 = vadd.s32 %v354, %v353
        %vm357 = vcmp.lt.s32.totalorder %v355, 40
        %vm358 = vcmp.lt.s32.totalorder %v356, 40
        %v359 = vsel %vm357, %v348, 0.0
        %v360 = vsel %vm358, %v349, 0.0
        %v361 = vld [vmem:[#allocation2] sm:$0x1]
        %v362 = vadd.f32 %v359, %v360
        %v363 = vrot.slane %v362, 4
        %v364 = vadd.f32 %v362, %v363
        %v365 = vrot.slane %v364, 2
        %v366 = vadd.f32 %v364, %v365
        %v367 = vrot.slane %v366, 1
        %v368 = vadd.f32 %v366, %v367
        %v369 = vadd.f32 %v361, %v368
        %vm370 = vcmask 0
        %371 = vst.msk [vmem:[#allocation2] sm:$0x1] %vm370, %v369
        %p372 = scmp.eq.s32.totalorder %s17, 2
        // Predicated region
        $region45: #{tpu_custom_call.1} parent=39 // pred_check
          %p373 = pneg %p372
        $region46: #{tpu_custom_call.1} parent=39 // pred_check_branch
          %375 = sbr.rel (%p373) target = $region48
        $region47: #{tpu_custom_call.1} parent=39 // pred_region
          %v376 = vld [vmem:[#allocation2] sm:$0x1]
          %v377 = vmul.f32 %v376, 0.025
          %378 = vst.msk [vmem:[#allocation3] sm:$0x1] %vm370, %v377
        $region48: #{tpu_custom_call.1} parent=39 // pred_fallthru
          _
        // Predicated region
        $region49: #{tpu_custom_call.1} parent=39 // pred_check
          %p379 = pneg %p145
        $region50: #{tpu_custom_call.1} parent=39 // pred_check_branch
          %381 = sbr.rel (%p379) target = $region52
        $region51: #{tpu_custom_call.1} parent=39 // pred_region
          %s383 = ssub.s32 16, 16
          %384 = vsyncadd [#allocation4], %s383
          %s386 = sshll.u32 [#allocation3], 4
          %s387 = int_to_ptr.vmem [resolvable:$true] %s386
          %389 = dma.vmem_to_hbm [thread:$0]  %s387, 16, %s5, [#allocation4]
        $region52: #{tpu_custom_call.1} parent=39 // pred_fallthru
          _
        // Predicated region
        $region53: #{tpu_custom_call.1} parent=39 // pred_check
          %p390 = pneg %p145
        $region54: #{tpu_custom_call.1} parent=39 // pred_check_branch
          %392 = sbr.rel (%p390) target = $region56
        $region55: #{tpu_custom_call.1} parent=39 // pred_region
          %393 = dma.done [#allocation4], 16
        $region56: #{tpu_custom_call.1} parent=39 // pred_fallthru
          _
      $region40: #{tpu_custom_call.1} parent=5 // pred_fallthru
        _
      %p394 = scmp.le.s32.totalorder 2, %s12
      // Predicated region
      $region57: #{tpu_custom_call.1} parent=5 // pred_check
        %p395 = pneg %p394
      $region58: #{tpu_custom_call.1} parent=5 // pred_check_branch
        %397 = sbr.rel (%p395) target = $region60
      $region59: #{tpu_custom_call.1} parent=5 // pred_region
        %s398 = ssub.s32 %s12, 2
      $region60: #{tpu_custom_call.1} parent=5 // pred_fallthru
        _
    $region6: #{tpu_custom_call.1} parent=1 // loop_footer
      %s16 = sadd.s32 1, %s12
    $region7: #{tpu_custom_call.1} parent=1 // loop_footer_branch
      %11 = sbr.rel target = $region3
    $region8: #{tpu_custom_call.1} parent=1 // loop_exit
      _
    %399 = vsyncpa [#allocation4], 1
    %s400 = scalar_lea.sflag [#allocation4], 1
    %401 = vsyncpa %s400, 1

</llo_original>
